<compile_context>
chip_gen: v6e
topology: v6e:2x2x1
jax: 0.10.0
libtpu: 0.0.40
codegen_flags: <defaults>
</compile_context>

<pallas_src>
import functools

import jax
import jax.numpy as jnp
from jax.experimental import pallas as pl
from jax.experimental.pallas import tpu as pltpu


def _round_up(x, m):
    return ((x + m - 1) // m) * m


def _cdiv(a, b):
    return -(-a // b)


# --------------------------------------------------------------------------------------
# Kernel body: one (TN, F) x tile  @  resident (F, D) folded weight  + bias, LeakyReLU.
# --------------------------------------------------------------------------------------
def _neck_kernel(x_ref, w_ref, b_ref, o_ref, *, neg_slope, compute_dtype):
    x = x_ref[...].astype(compute_dtype)                       # (TN, F) -> MXU dtype
    w = w_ref[...]                                             # (F, D), already compute_dtype
    y = jnp.dot(x, w, preferred_element_type=jnp.float32)      # f32 accumulation on MXU
    y = y + b_ref[...]                                         # (1, D) f32 bias broadcast
    # LeakyReLU(neg_slope): max(y, a*y) is exact for 0 < a < 1.
    o_ref[...] = jnp.maximum(y, neg_slope * y).astype(o_ref.dtype)
    # TODO(synk): training-mode Dropout(0.2) (pltpu.prng_*) and batch-statistics BatchNorm
    #             are not implemented (inference-only semantics).


# --------------------------------------------------------------------------------------
# One-time fold of eval-mode BatchNorm into the Linear layer (hoist out of the hot path).
# --------------------------------------------------------------------------------------
def fold_neck_params(gamma, beta, running_mean, running_var, weight, bias,
                     *, eps=1e-5, compute_dtype=jnp.bfloat16):
    """weight: (D, 128) PyTorch Linear layout. Returns (w_folded (128, D) compute_dtype,
    b_folded (1, D) f32)."""
    scale = gamma * jax.lax.rsqrt(running_var + eps)           # (F,)
    shift = beta - running_mean * scale                        # (F,)
    w_t = weight.T.astype(jnp.float32)                         # (F, D)
    w_folded = (scale[:, None] * w_t).astype(compute_dtype)    # (F, D) in MXU dtype
    b_folded = (shift @ w_t + bias).astype(jnp.float32).reshape(1, -1)
    return w_folded, b_folded


# --------------------------------------------------------------------------------------
# Hot path: takes already-folded parameters.
# --------------------------------------------------------------------------------------
def neck_forward_folded(x, w_folded, b_folded, *, neg_slope=0.2, tile_n=2048, out_dtype=None):
    """x: (N, 128). w_folded: (128, D) in the MXU compute dtype. b_folded: (1, D) f32.
    Returns (N, D) in out_dtype (defaults to x.dtype)."""
    N, F = x.shape
    Fw, D = w_folded.shape
    assert Fw == F, f"feature mismatch: x has {F}, folded weight has {Fw}"
    out_dtype = out_dtype if out_dtype is not None else x.dtype
    compute_dtype = w_folded.dtype

    x_bytes = jnp.dtype(x.dtype).itemsize
    out_bytes = jnp.dtype(out_dtype).itemsize
    w_bytes = jnp.dtype(compute_dtype).itemsize

    # ---- Row-tile selection: big tiles (amortize per-step overhead), but keep >=4 tiles
    #      for megacore sharding when N allows, and fit the per-generation VMEM budget.
    TN = min(tile_n, _round_up(max(N, 1), 8))
    if N > 4 * 8:
        TN = min(TN, _round_up(_cdiv(N, 4), 8))
    TN = max(TN, 8)

    try:
        vmem_cap = int(pltpu.get_tpu_info().vmem_capacity_bytes)   # 128 MiB v5e/v6e, 64 MiB v7x
    except Exception:
        vmem_cap = 64 * 1024 * 1024                                # conservative fallback
    budget = vmem_cap // 2

    def footprint(tn):
        # double-buffered x tile + out tile, plus resident weight & bias
        return 2 * tn * (F * x_bytes + D * out_bytes) + F * D * w_bytes + 4 * D

    while TN > 8 and footprint(TN) > budget:
        TN = max(8, _round_up(TN // 2, 8))

    vmem_limit = int(min(max(2 * footprint(TN), 32 * 1024 * 1024), budget))

    grid = (_cdiv(N, TN),)   # ragged final block handled by Pallas (no jnp.pad of x)

    kernel = functools.partial(_neck_kernel, neg_slope=neg_slope, compute_dtype=compute_dtype)

    return pl.pallas_call(
        kernel,
        out_shape=jax.ShapeDtypeStruct((N, D), out_dtype),
        grid=grid,
        in_specs=[
            pl.BlockSpec((TN, F), lambda i: (i, 0)),   # x tile, streams over N
            pl.BlockSpec((F, D), lambda i: (0, 0)),    # folded W^T, resident (full-array block)
            pl.BlockSpec((1, D), lambda i: (0, 0)),    # folded bias, resident
        ],
        out_specs=pl.BlockSpec((TN, D), lambda i: (i, 0)),   # full-D last dim, no padding/slice
        compiler_params=pltpu.CompilerParams(
            dimension_semantics=("parallel",),          # shard row-tiles across TCs (v7x)
            vmem_limit_bytes=vmem_limit,
        ),
    )(x, w_folded, b_folded)


# Convenience wrapper: fold + run (use fold_neck_params once at model load for hot loops).
def neck_forward(x, gamma, beta, running_mean, running_var, weight, bias,
                 *, eps=1e-5, neg_slope=0.2, compute_dtype=jnp.bfloat16,
                 tile_n=2048, out_dtype=None):
    w_folded, b_folded = fold_neck_params(gamma, beta, running_mean, running_var,
                                          weight, bias, eps=eps, compute_dtype=compute_dtype)
    return neck_forward_folded(x, w_folded, b_folded, neg_slope=neg_slope,
                               tile_n=tile_n, out_dtype=out_dtype)


def _reference(x, gamma, beta, mean, var, weight, bias, eps=1e-5, neg_slope=0.2):
    xn = (x - mean) / jnp.sqrt(var + eps) * gamma + beta
    y = xn @ weight.T + bias
    return jnp.where(y >= 0, y, neg_slope * y)


if __name__ == "__main__":
    N, F, D = 8, 128, 32   # batch=8, in_features=128 (fixed by the module), output_dim=32

    key = jax.random.PRNGKey(0)
    kx, kw, kb, km, kv = jax.random.split(key, 5)

    x = jax.random.normal(kx, (N, F), dtype=jnp.float32)

    # Deterministic parameters (shapes follow Neck.__init__ / PyTorch conventions)
    gamma = jnp.ones((F,), dtype=jnp.float32)                  # BN weight
    beta = jnp.zeros((F,), dtype=jnp.float32)                  # BN bias
    running_mean = 0.1 * jax.random.normal(km, (F,), dtype=jnp.float32)
    running_var = 1.0 + 0.05 * jax.random.uniform(kv, (F,), dtype=jnp.float32)

    bound = 1.0 / jnp.sqrt(F)
    weight = jax.random.uniform(kw, (D, F), minval=-bound, maxval=bound, dtype=jnp.float32)
    bias = jax.random.uniform(kb, (D,), minval=-bound, maxval=bound, dtype=jnp.float32)

    ref = _reference(x, gamma, beta, running_mean, running_var, weight, bias)

    # Exact path (f32 MXU operands) -- tight tolerance vs the PyTorch-equivalent reference.
    out_f32 = neck_forward(x, gamma, beta, running_mean, running_var, weight, bias,
                           compute_dtype=jnp.float32)
    out_f32 = jax.block_until_ready(out_f32)
    assert out_f32.shape == (N, D)
    assert jnp.allclose(out_f32, ref, atol=1e-4, rtol=1e-4)

    # Fast path (bf16 MXU operands, f32 accumulation) -- the recommended v6e/v7x config.
    out_bf16 = neck_forward(x, gamma, beta, running_mean, running_var, weight, bias,
                            compute_dtype=jnp.bfloat16)
    out_bf16 = jax.block_until_ready(out_bf16)
    assert out_bf16.shape == (N, D)
    assert jnp.allclose(out_bf16, ref, atol=3e-2, rtol=3e-2)

    print("KERNEL_OK")
</pallas_src>

<mosaic_0001>
module attributes {stable_mosaic.version = 11 : i64} {
  func.func @_neck_kernel(%arg0: i32, %arg1: memref<8x128xf32, #tpu.memory_space<vmem>>, %arg2: memref<128x32xf32, #tpu.memory_space<vmem>>, %arg3: memref<1x32xf32, #tpu.memory_space<vmem>>, %arg4: memref<8x32xf32, #tpu.memory_space<vmem>>) attributes {dimension_semantics = [#tpu.dimension_semantics<parallel>], iteration_bounds = array<i64: 1>, scalar_prefetch = 0 : i64, scratch_operands = 0 : i64, tpu.core_type = #tpu.core_type<tc>, window_params = [{transform_indices = @transform_0, window_bounds = array<i64: 8, 128>}, {pipeline_mode = #tpu.pipeline_mode<synchronous>, transform_indices = @transform_1, window_bounds = array<i64: 128, 32>}, {pipeline_mode = #tpu.pipeline_mode<synchronous>, transform_indices = @transform_2, window_bounds = array<i64: 1, 32>}, {transform_indices = @transform_3, window_bounds = array<i64: 8, 32>}]} {
    %c0 = arith.constant 0 : index
    %c0_0 = arith.constant 0 : index
    %0 = vector.load %arg1[%c0, %c0_0] : memref<8x128xf32, #tpu.memory_space<vmem>>, vector<8x128xf32>
    %c0_1 = arith.constant 0 : index
    %c0_2 = arith.constant 0 : index
    %1 = vector.load %arg2[%c0_1, %c0_2] : memref<128x32xf32, #tpu.memory_space<vmem>>, vector<128x32xf32>
    %cst = arith.constant dense<0.000000e+00> : vector<8x32xf32>
    %2 = tpu.matmul %0, %1, %cst {dimension_numbers = #tpu.dot_dimension_numbers<[1], [0], [0], [1], [0, 0, 1, 1], [], []>} : vector<8x128xf32>, vector<128x32xf32>, vector<8x32xf32> -> vector<8x32xf32>
    %c0_3 = arith.constant 0 : index
    %c0_4 = arith.constant 0 : index
    %3 = vector.load %arg3[%c0_3, %c0_4] : memref<1x32xf32, #tpu.memory_space<vmem>>, vector<1x32xf32>
    %4 = vector.broadcast %3 : vector<1x32xf32> to vector<8x32xf32>
    %5 = arith.addf %2, %4 : vector<8x32xf32>
    %cst_5 = arith.constant 2.000000e-01 : f32
    %6 = vector.broadcast %cst_5 : f32 to vector<8x32xf32>
    %7 = arith.mulf %6, %5 : vector<8x32xf32>
    %8 = arith.maximumf %5, %7 : vector<8x32xf32>
    %c0_6 = arith.constant 0 : index
    %c0_7 = arith.constant 0 : index
    %9 = vector.load %arg4[%c0_6, %c0_7] : memref<8x32xf32, #tpu.memory_space<vmem>>, vector<8x32xf32>
    tpu.vector_store %arg4[%c0_6, %c0_7], %8 {strides = array<i32>} : memref<8x32xf32, #tpu.memory_space<vmem>>, vector<8x32xf32>,
    return
  }
  func.func @transform_0(%arg0: i32) -> (i32, i32) {
    %c0_i32 = arith.constant 0 : i32
    %c0_i32_0 = arith.constant 0 : i32
    return %arg0, %c0_i32 : i32, i32
  }
  func.func @transform_1(%arg0: i32) -> (i32, i32) {
    %c0_i32 = arith.constant 0 : i32
    %c0_i32_0 = arith.constant 0 : i32
    %c0_i32_1 = arith.constant 0 : i32
    return %c0_i32, %c0_i32_0 : i32, i32
  }
  func.func @transform_2(%arg0: i32) -> (i32, i32) {
    %c0_i32 = arith.constant 0 : i32
    %c0_i32_0 = arith.constant 0 : i32
    %c0_i32_1 = arith.constant 0 : i32
    return %c0_i32, %c0_i32_0 : i32, i32
  }
  func.func @transform_3(%arg0: i32) -> (i32, i32) {
    %c0_i32 = arith.constant 0 : i32
    %c0_i32_0 = arith.constant 0 : i32
    return %arg0, %c0_i32 : i32, i32
  }
}

</mosaic_0001>

<llo_original>
// kernel: tpu_custom_call.1
$region0: #{tpu_custom_call.1}
  #allocation0 [shape = 'u32[]', space=smem, size = 0x4, offset = 0x4, fixed_abs, tag = 'smem constant byte address 0x4 - core index']
  #allocation1 [shape = 'u32[144,128]{1,0:T(1,128)}', space=vmem, size = 0x12000, scoped, tag = 'internal scratch']
  %s0 = inlined_call_operand.vmem [shape: f32[8,128], index: 0, kind: input, shape index: {}]
  %s1 = inlined_call_operand.vmem [shape: f32[128,32], index: 1, kind: input, shape index: {}]
  %s2 = inlined_call_operand.vmem [shape: f32[1,32], index: 2, kind: input, shape index: {}]
  %s3 = inlined_call_operand.hbm [shape: f32[8,32], index: 3, kind: output, shape index: {}]
  %s4 = sld [smem:[#allocation0]]
  $region22: #{tpu_custom_call.1} parent=0
    _
  %s6 = ssub.s32 1, %s4
  %s7 = scalar_select 0, %s6, %s4
  $region1: #{tpu_custom_call.1} parent=0
    #allocation2 [shape = 'u8[4096]{0}', space=vmem, size = 0x1000, scoped, tag = 'output window, operand 0, single buffered']
    #allocation3 [shape = 's32[1]{0}', space=sflag, size = 0x4, scoped, tag = 'scoped memory for tpu_custom_call.1']
    %8 = vsyncpa [#allocation3], 0
    // Predicated region
    $region2: #{tpu_custom_call.1} parent=1 // pred_check
      _
    $region3: #{tpu_custom_call.1} parent=1 // pred_check_branch
      %10 = sbr.rel (0) target = $region5
    $region4: #{tpu_custom_call.1} parent=1 // pred_region
      _
    $region5: #{tpu_custom_call.1} parent=1 // pred_fallthru
      _
    // Predicated region
    $region6: #{tpu_custom_call.1} parent=1 // pred_check
      _
    $region7: #{tpu_custom_call.1} parent=1 // pred_check_branch
      %12 = sbr.rel (0) target = $region9
    $region8: #{tpu_custom_call.1} parent=1 // pred_region
      _
    $region9: #{tpu_custom_call.1} parent=1 // pred_fallthru
      _
    // Predicated region
    $region10: #{tpu_custom_call.1} parent=1 // pred_check
      _
    $region11: #{tpu_custom_call.1} parent=1 // pred_check_branch
      %14 = sbr.rel (0) target = $region13
    $region12: #{tpu_custom_call.1} parent=1 // pred_region
      _
    $region13: #{tpu_custom_call.1} parent=1 // pred_fallthru
      _
    %v15 = vld [vmem:[%s0] sm:$0xff]
    %v16 = vld [vmem:[%s1] sm:$0xff]
    %v17 = vld [vmem:[%s1 + $0x8] sm:$0xff]
    %v18 = vld [vmem:[%s1 + $0x10] sm:$0xff]
    %v19 = vld [vmem:[%s1 + $0x18] sm:$0xff]
    %v20 = vld [vmem:[%s1 + $0x20] sm:$0xff]
    %v21 = vld [vmem:[%s1 + $0x28] sm:$0xff]
    %v22 = vld [vmem:[%s1 + $0x30] sm:$0xff]
    %v23 = vld [vmem:[%s1 + $0x38] sm:$0xff]
    %v24 = vld [vmem:[%s1 + $0x40] sm:$0xff]
    %v25 = vld [vmem:[%s1 + $0x48] sm:$0xff]
    %v26 = vld [vmem:[%s1 + $0x50] sm:$0xff]
    %v27 = vld [vmem:[%s1 + $0x58] sm:$0xff]
    %v28 = vld [vmem:[%s1 + $0x60] sm:$0xff]
    %v29 = vld [vmem:[%s1 + $0x68] sm:$0xff]
    %v30 = vld [vmem:[%s1 + $0x70] sm:$0xff]
    %v31 = vld [vmem:[%s1 + $0x78] sm:$0xff]
    %v32 = vld [vmem:[%s2] sm:$0x1]
    %v34 = vlaneseq
    %v35 = vshrl.u32 %v34, 7
    %v36 = vsub.s32 0, %v35
    %v37 = vrot.slane %v32, %v36
    %39 = vmatprep.subr.mxu0 0.0
    %40 = vmatpush1.msra.mxu0 %v31
    %41 = vmatprep.subr.mxu0 0.0
    %42 = vmatpush1.msra.mxu0 %v30
    %43 = vmatprep.subr.mxu0 0.0
    %44 = vmatpush1.msra.mxu0 %v29
    %45 = vmatprep.subr.mxu0 0.0
    %46 = vmatpush1.msra.mxu0 %v28
    %47 = vmatprep.subr.mxu0 0.0
    %48 = vmatpush1.msra.mxu0 %v27
    %49 = vmatprep.subr.mxu0 0.0
    %50 = vmatpush1.msra.mxu0 %v26
    %51 = vmatprep.subr.mxu0 0.0
    %52 = vmatpush1.msra.mxu0 %v25
    %53 = vmatprep.subr.mxu0 0.0
    %54 = vmatpush1.msra.mxu0 %v24
    %55 = vmatprep.subr.mxu0 0.0
    %56 = vmatpush1.msra.mxu0 %v23
    %57 = vmatprep.subr.mxu0 0.0
    %58 = vmatpush1.msra.mxu0 %v22
    %59 = vmatprep.subr.mxu0 0.0
    %60 = vmatpush1.msra.mxu0 %v21
    %61 = vmatprep.subr.mxu0 0.0
    %62 = vmatpush1.msra.mxu0 %v20
    %63 = vmatprep.subr.mxu0 0.0
    %64 = vmatpush1.msra.mxu0 %v19
    %65 = vmatprep.subr.mxu0 0.0
    %66 = vmatpush1.msra.mxu0 %v18
    %67 = vmatprep.subr.mxu0 0.0
    %68 = vmatpush1.msra.mxu0 %v17
    %69 = vmatprep.subr.mxu0 0.0
    %70 = vmatpush1.msra.mxu0 %v16
    %71 = vmatprep.subr.mxu0 0.0
    %72 = vmatpush2.msra.mxu0 0.0
    %73 = vmatprep.subr.mxu0 0.0
    %74 = vmatpush2.msra.mxu0 0.0
    %75 = vmatprep.subr.mxu0 0.0
    %76 = vmatpush2.msra.mxu0 0.0
    %77 = vmatprep.subr.mxu0 0.0
    %78 = vmatpush2.msra.mxu0 0.0
    %79 = vmatprep.subr.mxu0 0.0
    %80 = vmatpush2.msra.mxu0 0.0
    %81 = vmatprep.subr.mxu0 0.0
    %82 = vmatpush2.msra.mxu0 0.0
    %83 = vmatprep.subr.mxu0 0.0
    %84 = vmatpush2.msra.mxu0 0.0
    %85 = vmatprep.subr.mxu0 0.0
    %86 = vmatpush2.msra.mxu0 0.0
    %87 = vmatprep.subr.mxu0 0.0
    %88 = vmatpush2.msra.mxu0 0.0
    %89 = vmatprep.subr.mxu0 0.0
    %90 = vmatpush2.msra.mxu0 0.0
    %91 = vmatprep.subr.mxu0 0.0
    %92 = vmatpush2.msra.mxu0 0.0
    %93 = vmatprep.subr.mxu0 0.0
    %94 = vmatpush2.msra.mxu0 0.0
    %95 = vmatprep.subr.mxu0 0.0
    %96 = vmatpush2.msra.mxu0 0.0
    %97 = vmatprep.subr.mxu0 0.0
    %98 = vmatpush2.msra.mxu0 0.0
    %99 = vmatprep.subr.mxu0 0.0
    %100 = vmatpush2.msra.mxu0 0.0
    %101 = vmatprep.subr.mxu0 0.0
    %102 = vmatpush2.msra.mxu0 0.0
    %103 = vmatprep.mubr.f32.mxu0 0.0
    %104 = vmatmul.mubr.f32.gmra.mxu0 %v15
    %v105 = vpop.f32.mrf.mxu0
    %v106 = vadd.f32 %v37, %v105
    %v107 = vpop.f32.mrf.mxu0
    %108 = vdwg.mxu0
    %v109 = vmul.f32 %v106, 0.2
    %v110 = vmax.f32 %v106, %v109
    %vm111 = vcmask 261120
    %112 = vst.msk [vmem:[#allocation2] sm:$0xff] %vm111, %v110
    // Predicated region
    $region14: #{tpu_custom_call.1} parent=1 // pred_check
      _
    $region15: #{tpu_custom_call.1} parent=1 // pred_check_branch
      %114 = sbr.rel (0) target = $region17
    $region16: #{tpu_custom_call.1} parent=1 // pred_region
      %s116 = ssub.s32 128, 128
      %117 = vsyncadd [#allocation3], %s116
      %s119 = sshll.u32 [#allocation2], 4
      %s120 = int_to_ptr.vmem [resolvable:$true] %s119
      %122 = dma.vmem_to_hbm [thread:$0]  %s120, 128, %s3, [#allocation3]
    $region17: #{tpu_custom_call.1} parent=1 // pred_fallthru
      _
    // Predicated region
    $region18: #{tpu_custom_call.1} parent=1 // pred_check
      _
    $region19: #{tpu_custom_call.1} parent=1 // pred_check_branch
      %124 = sbr.rel (0) target = $region21
    $region20: #{tpu_custom_call.1} parent=1 // pred_region
      %125 = dma.done [#allocation3], 128
    $region21: #{tpu_custom_call.1} parent=1 // pred_fallthru
      _
    %126 = vsyncpa [#allocation3], 1

</llo_original>
